<compile_context>
chip_gen: v6e
topology: v6e:2x2x1
jax: 0.10.0
libtpu: 0.0.40
codegen_flags: <defaults>
</compile_context>

<pallas_src>
import functools

import jax
import jax.numpy as jnp
from jax.experimental import pallas as pl
from jax.experimental.pallas import tpu as pltpu

LANES = 128                          # vreg lane width (fast axis)
BASE_SUBLANES = 8                    # f32 sublane tile; packed dtypes need 16/32
TARGET_BLOCK_TOTAL_BYTES = 8 << 20   # ~8 MiB of (in + out) per grid step
MIN_GRID_STEPS = 4                   # only enforced on multi-TensorCore chips
VMEM_HEADROOM_BYTES = 8 << 20        # slack on top of double-buffered in+out


def _mult_act_kernel(ratio_ref, x_ref, o_ref, *, core):
    # ratio_ref: (1,) f32 scalar in SMEM (the trainable `ratio` parameter).
    # x_ref / o_ref: (block_rows, 128) tiles in VMEM, kept in the native
    # dtypes so the DMA moves native-width data; the f32 upcast is a
    # vreg-level VPU op (required anyway on v5e, no bf16 VPU/EUP path).
    r = ratio_ref[0]
    x = x_ref[...].astype(jnp.float32)
    # TODO(synk): on v7x (~3.2 TB/s HBM) check the bundle dump — if the f32 sin
    # polynomial saturates VALU, swap in a cheaper range-reduction/polynomial.
    o_ref[...] = core(x * r).astype(o_ref.dtype)


def _sublanes_for(dtype) -> int:
    """Native sublane tile: 8 for 4-byte, 16 for 2-byte, 32 for 1-byte dtypes."""
    itemsize = jnp.dtype(dtype).itemsize
    return BASE_SUBLANES * max(1, 4 // max(1, itemsize))


def _is_multi_tensorcore_chip() -> bool:
    """True for chips whose 'parallel' grid axis shards across >1 TensorCore."""
    try:
        kind = jax.devices()[0].device_kind.lower()
    except Exception:
        return False
    return ("v7" in kind) or ("7x" in kind) or ("v4" in kind) or ("v5p" in kind)


def _choose_block_rows(rows: int, sub: int, in_itemsize: int, out_itemsize: int,
                       multi_core: bool) -> int:
    """Largest block whose in+out bytes are ~TARGET_BLOCK_TOTAL_BYTES.

    On multi-TC chips (v7x / megacore) the block is additionally capped so the
    grid has >= MIN_GRID_STEPS steps for large inputs; on single-TC v5e/v6e the
    grid is a serial loop, so no such floor is applied.
    """
    bytes_per_row = LANES * (in_itemsize + out_itemsize)
    target_rows = max(sub, (TARGET_BLOCK_TOTAL_BYTES // bytes_per_row) // sub * sub)
    block_rows = min(rows, target_rows)
    if multi_core and rows > MIN_GRID_STEPS * sub:
        cap = max(sub, (rows // MIN_GRID_STEPS) // sub * sub)
        block_rows = min(block_rows, cap)
    return block_rows


def multiplied_activation(x: jax.Array, ratio: jax.Array, core=jnp.sin) -> jax.Array:
    """Computes core(x * ratio) with the elementwise hot path in Pallas.

    x: any-shape array (NCHW in the example).  `core` must be elementwise.
    ratio: shape (1,) float32 parameter (as in the PyTorch module).
    """
    orig_shape = x.shape
    in_dtype = x.dtype
    # Non-float inputs produce f32 output (sin output cannot live in an int
    # dtype); the cast happens in-registers inside the kernel — no wrapper pass.
    out_dtype = in_dtype if jnp.issubdtype(in_dtype, jnp.floating) else jnp.float32

    ratio_f32 = jnp.asarray(ratio, jnp.float32).reshape(1)

    flat = x.reshape(-1)
    n = flat.shape[0]
    if n == 0:
        return jnp.zeros(orig_shape, out_dtype)

    in_itemsize = jnp.dtype(in_dtype).itemsize
    out_itemsize = jnp.dtype(out_dtype).itemsize
    sub = max(_sublanes_for(in_dtype), _sublanes_for(out_dtype))
    min_tile = sub * LANES

    def _small(v):  # pure-XLA elementwise path for the tiny unaligned tail
        return core(v.astype(jnp.float32) * ratio_f32[0]).astype(out_dtype)

    n_main = (n // min_tile) * min_tile
    if n_main == 0:
        # Smaller than one aligned vreg tile: not worth a kernel launch.
        return _small(flat).reshape(orig_shape)

    rows = n_main // LANES                      # multiple of `sub` by construction
    x2d = flat[:n_main].reshape(rows, LANES)

    block_rows = _choose_block_rows(rows, sub, in_itemsize, out_itemsize,
                                    _is_multi_tensorcore_chip())
    grid = (pl.cdiv(rows, block_rows),)         # partial last block stays sub-aligned

    block_total_bytes = block_rows * LANES * (in_itemsize + out_itemsize)
    vmem_limit = min(max(2 * block_total_bytes + VMEM_HEADROOM_BYTES, 16 << 20),
                     48 << 20)                  # stays under v7x's 64 MiB physical

    out2d = pl.pallas_call(
        functools.partial(_mult_act_kernel, core=core),
        out_shape=jax.ShapeDtypeStruct((rows, LANES), out_dtype),
        grid_spec=pltpu.PrefetchScalarGridSpec(
            num_scalar_prefetch=0,
            grid=grid,
            in_specs=[
                pl.BlockSpec(memory_space=pltpu.SMEM),                # ratio scalar
                pl.BlockSpec((block_rows, LANES), lambda i: (i, 0)),  # x tile
            ],
            out_specs=pl.BlockSpec((block_rows, LANES), lambda i: (i, 0)),
        ),
        compiler_params=pltpu.CompilerParams(
            dimension_semantics=("parallel",),
            vmem_limit_bytes=vmem_limit,
        ),
        cost_estimate=pl.CostEstimate(
            flops=n_main,
            transcendentals=n_main,
            bytes_accessed=n_main * (in_itemsize + out_itemsize),
        ),
    )(ratio_f32, x2d)

    out_main = out2d.reshape(-1)
    if n_main == n:
        return out_main.reshape(orig_shape)
    out_tail = _small(flat[n_main:])
    return jnp.concatenate([out_main, out_tail]).reshape(orig_shape)


if __name__ == "__main__":
    key = jax.random.PRNGKey(0)
    k1, k2 = jax.random.split(key)

    # NCHW input, consistent with a PyTorch conv-style tensor (2048 elements,
    # fully aligned -> single-round-trip Pallas path).
    x = jax.random.normal(k1, (2, 4, 16, 16), dtype=jnp.float32)

    # Deterministic parameter init: ratio = 2.0 (module __init__ takes `ratio`).
    ratio = jnp.array([2.0], dtype=jnp.float32)

    # `_core` is abstract in the reference module; jnp.sin (cflearn's `Sine`
    # subclass) is used as the concrete activation here.
    out = multiplied_activation(x, ratio, core=jnp.sin)
    jax.block_until_ready(out)
    ref = jnp.sin(x * ratio[0])
    assert out.shape == x.shape and out.dtype == x.dtype
    assert float(jnp.max(jnp.abs(out - ref))) < 1e-5

    # Unaligned size (1500 elements): aligned prefix through Pallas + jnp tail.
    x_u = jax.random.normal(k2, (5, 300), dtype=jnp.float32)
    out_u = multiplied_activation(x_u, ratio, core=jnp.sin)
    jax.block_until_ready(out_u)
    ref_u = jnp.sin(x_u * ratio[0])
    assert out_u.shape == x_u.shape and out_u.dtype == x_u.dtype
    assert float(jnp.max(jnp.abs(out_u - ref_u))) < 1e-5

    print("KERNEL_OK")
</pallas_src>

<mosaic_0001>
module attributes {stable_mosaic.version = 11 : i64} {
  func.func @_mult_act_kernel(%arg0: i32, %arg1: memref<1xf32, #tpu.memory_space<smem>>, %arg2: memref<16x128xf32, #tpu.memory_space<vmem>>, %arg3: memref<16x128xf32, #tpu.memory_space<vmem>>) attributes {dimension_semantics = [#tpu.dimension_semantics<parallel>], iteration_bounds = array<i64: 1>, scalar_prefetch = 0 : i64, scratch_operands = 0 : i64, tpu.core_type = #tpu.core_type<tc>, window_params = [{transform_indices = @transform_0, window_bounds = array<i64: 1>}, {transform_indices = @transform_1, window_bounds = array<i64: 16, 128>}, {transform_indices = @transform_2, window_bounds = array<i64: 16, 128>}]} {
    %c0 = arith.constant 0 : index
    %0 = memref.load %arg1[%c0] : memref<1xf32, #tpu.memory_space<smem>>
    %c0_0 = arith.constant 0 : index
    %c0_1 = arith.constant 0 : index
    %1 = vector.load %arg2[%c0_0, %c0_1] : memref<16x128xf32, #tpu.memory_space<vmem>>, vector<16x128xf32>
    %2 = vector.broadcast %0 : f32 to vector<16x128xf32>
    %3 = arith.mulf %1, %2 : vector<16x128xf32>
    %4 = math.sin %3 : vector<16x128xf32>
    %c0_2 = arith.constant 0 : index
    %c0_3 = arith.constant 0 : index
    %5 = vector.load %arg3[%c0_2, %c0_3] : memref<16x128xf32, #tpu.memory_space<vmem>>, vector<16x128xf32>
    tpu.vector_store %arg3[%c0_2, %c0_3], %4 {strides = array<i32>} : memref<16x128xf32, #tpu.memory_space<vmem>>, vector<16x128xf32>,
    return
  }
  func.func @transform_0(%arg0: i32) -> i32 {
    %c0_i32 = arith.constant 0 : i32
    %c0_i32_0 = arith.constant 0 : i32
    return %c0_i32 : i32
  }
  func.func @transform_1(%arg0: i32) -> (i32, i32) {
    %c0_i32 = arith.constant 0 : i32
    %c0_i32_0 = arith.constant 0 : i32
    return %arg0, %c0_i32 : i32, i32
  }
  func.func @transform_2(%arg0: i32) -> (i32, i32) {
    %c0_i32 = arith.constant 0 : i32
    %c0_i32_0 = arith.constant 0 : i32
    return %arg0, %c0_i32 : i32, i32
  }
}

</mosaic_0001>

<llo_original>
// kernel: tpu_custom_call.1
$region0: #{tpu_custom_call.1}
  #allocation0 [shape = 'u32[]', space=smem, size = 0x4, offset = 0x4, fixed_abs, tag = 'smem constant byte address 0x4 - core index']
  #allocation1 [shape = 'u32[144,128]{1,0:T(1,128)}', space=vmem, size = 0x12000, scoped, tag = 'internal scratch']
  #allocation2 [shape = 'f32[1]{0:T(128)S(6)}', space=smem, size = 0x200, scoped, tag = 'scoped memory for tpu_custom_call.1']
  %s0 = inlined_call_operand.<no memory space> [shape: f32[1], index: 0, kind: input, shape index: {}]
  %s1 = inlined_call_operand.hbm [shape: f32[16,128], index: 1, kind: input, shape index: {}]
  %s2 = inlined_call_operand.hbm [shape: f32[16,128], index: 2, kind: output, shape index: {}]
  %s3 = sld [smem:[#allocation0]]
  $region22: #{tpu_custom_call.1} parent=0
    _
  %s5 = ssub.s32 1, %s3
  %s6 = scalar_select 0, %s5, %s3
  %7 = sst [smem:[#allocation2]] %s0
  $region1: #{tpu_custom_call.1} parent=0
    #allocation3 [shape = 'u8[8192]{0}', space=vmem, size = 0x2000, scoped, tag = 'input window, operand 1, single buffered']
    #allocation4 [shape = 's32[1]{0}', space=sflag, size = 0x4, scoped, tag = 'scoped memory for tpu_custom_call.1']
    #allocation5 [shape = 's32[1]{0}', space=sflag, size = 0x4, scoped, tag = 'scoped memory for tpu_custom_call.1']
    #allocation6 [shape = 'u8[8192]{0}', space=vmem, size = 0x2000, scoped, tag = 'output window, operand 0, single buffered']
    %8 = vsyncpa [#allocation4], 0
    %9 = vsyncpa [#allocation5], 0
    // Predicated region
    $region2: #{tpu_custom_call.1} parent=1 // pred_check
      _
    $region3: #{tpu_custom_call.1} parent=1 // pred_check_branch
      %11 = sbr.rel (0) target = $region5
    $region4: #{tpu_custom_call.1} parent=1 // pred_region
      _
    $region5: #{tpu_custom_call.1} parent=1 // pred_fallthru
      _
    // Predicated region
    $region6: #{tpu_custom_call.1} parent=1 // pred_check
      _
    $region7: #{tpu_custom_call.1} parent=1 // pred_check_branch
      %13 = sbr.rel (0) target = $region9
    $region8: #{tpu_custom_call.1} parent=1 // pred_region
      %s15 = ssub.s32 256, 256
      %16 = vsyncadd [#allocation4], %s15
      %s17 = sshll.u32 [#allocation3], 4
      %s18 = int_to_ptr.vmem [resolvable:$true] %s17
      %23 = dma.hbm_to_vmem [thread:$0]  %s1, 256, %s18, [#allocation4], 128, 128, 8
    $region9: #{tpu_custom_call.1} parent=1 // pred_fallthru
      _
    // Predicated region
    $region10: #{tpu_custom_call.1} parent=1 // pred_check
      _
    $region11: #{tpu_custom_call.1} parent=1 // pred_check_branch
      %25 = sbr.rel (0) target = $region13
    $region12: #{tpu_custom_call.1} parent=1 // pred_region
      %26 = dma.done [#allocation4], 256
    $region13: #{tpu_custom_call.1} parent=1 // pred_fallthru
      _
    %s27 = sld [smem:[#allocation2]]
    %v28 = vld [vmem:[#allocation3] sm:$0xff]
    %v29 = vld [vmem:[#allocation3 + $0x8] sm:$0xff]
    %v30 = vstv %s27
    %v31 = vmul.f32 %v28, %v30
    %v32 = vmul.f32 %v29, %v30
    %v33 = vand.u32 2147483647, %v31
    %vm34 = vcmp.le.f32.partialorder %v33, 0.7853982
    %vm35 = vcmp.lt.s32.totalorder %v31, 0
    %v36 = vand.u32 %v31, 2139095040
    %v37 = vshrl.u32 %v36, 23
    %v38 = vsub.s32 %v37, 127
    %v39 = vand.u32 2147483647, %v31
    %v40 = vand.u32 %v39, 8388607
    %v41 = vor.u32 %v40, 8388608
    %v42 = vsub.s32 0, %v41
    %v43 = vadd.s32 %v38, 1
    %vm44 = vcmp.gt.s32.totalorder %v43, 0
    %v45 = vsel %vm44, %v43, 0
    %v46 = vshrl.u32 %v45, 5
    %v47 = vand.u32 %v45, 31
    %v48 = vsub.s32 32, %v47
    %v49 = vshrl.u32 683565275, %v48
    %v50 = vshll.u32 683565275, %v47
    %v51 = vshrl.u32 2475754826, %v48
    %v52 = vor.u32 %v50, %v51
    %v53 = vshll.u32 2475754826, %v47
    %v54 = vshrl.u32 2131351028, %v48
    %v55 = vor.u32 %v53, %v54
    %v56 = vshll.u32 2131351028, %v47
    %v57 = vshrl.u32 2102212464, %v48
    %v58 = vor.u32 %v56, %v57
    %v59 = vshll.u32 2102212464, %v47
    %v60 = vshrl.u32 920167782, %v48
    %v61 = vor.u32 %v59, %v60
    %v62 = vshll.u32 920167782, %v47
    %v63 = vshrl.u32 1326507024, %v48
    %v64 = vor.u32 %v62, %v63
    %vm65 = vcmp.lt.s32.totalorder %v46, 1
    %vm66 = vcmp.lt.s32.totalorder %v46, 2
    %vm67 = vcmp.lt.s32.totalorder %v46, 3
    %vm68 = vcmp.lt.s32.totalorder %v46, 4
    %v69 = vsel %vm65, %v49, %v52
    %v70 = vsel %vm68, %v58, 2102212464
    %v71 = vsel %vm67, %v55, %v70
    %v72 = vsel %vm66, %v69, %v71
    %v73 = vsel %vm65, %v52, %v55
    %v74 = vsel %vm68, %v61, 920167782
    %v75 = vsel %vm67, %v58, %v74
    %v76 = vsel %vm66, %v73, %v75
    %v77 = vsel %vm65, %v55, %v58
    %v78 = vsel %vm68, %v64, 1326507024
    %v79 = vsel %vm67, %v61, %v78
    %v80 = vsel %vm66, %v77, %v79
    %v81 = vshll.u32 %v41, 8
    %v82 = vmul.u32.u64.compose %v81, %v80
    %v83 = vextract.low.u32 %v82
    %v84 = vextract.high.u32 %v82
    %v85 = vmul.u32.u64.compose %v81, %v76
    %v86 = vextract.low.u32 %v85
    %v87 = vextract.high.u32 %v85
    %v88 = vmul.u32 %v81, %v72
    %v89 = vadd.s32 %v84, %v86
    %vm90 = vc.u32 %v84, %v86
    %v91 = vadd.s32 %v87, 1
    %v92 = vsel %vm90, %v91, %v87
    %v93 = vadd.s32 %v88, %v92
    %v94 = vadd.s32 %v93, 536870912
    %v95 = vshrl.u32 %v94, 30
    %v96 = vshll.u32 %v95, 30
    %v97 = vsub.s32 %v93, %v96
    %vm98 = vcmp.lt.s32.totalorder %v97, 0
    %v99 = vsub.s32 0, %v97
    %v100 = vsel %vm98, %v99, %v97
    %v101 = vclz %v100
    %v102 = vsub.s32 %v101, 2
    %vm103 = vcmp.gt.s32.totalorder 0, %v102
    %v104 = vsel %vm103, 0, %v102
    %v105 = vsub.s32 32, %v104
    %v106 = vshll.u32 %v97, %v104
    %v107 = vshrl.u32 %v89, %v105
    %v108 = vor.u32 %v106, %v107
    %v109 = vsub.s32 4294967266, %v104
    %v110 = vadd.s32 %v109, 127
    %v111 = vshll.u32 %v110, 23
    %v112 = vor.u32 4788187, %v111
    %v113 = vand.u32 2147483647, %v112
    %v115 = vcvt.s32.f32 %v108
    %v116 = vmul.f32 %v115, %v113
    %v117 = vxor.u32 %v116, 2147483648
    %v118 = vsel %vm35, %v117, %v116
    %v119 = vsub.s32 4, %v95
    %v120 = vsel %vm35, %v119, %v95
    %v121 = vsel %vm34, %v31, %v118
    %v122 = vsel %vm34, 0, %v120
    %v123 = vcosq.f32.pop %v121
    %v124 = vsinq.f32.pop %v121
    %vm125 = vweird.f32 %v31
    %v126 = vadd.s32 %v122, 3
    %v127 = vand.u32 %v126, 3
    %vm128 = vcmp.lt.s32.totalorder %v127, 2
    %vm129 = vcmp.eq.s32.totalorder %v127, 0
    %v130 = vxor.u32 %v124, 2147483648
    %v131 = vsel %vm129, %v123, %v130
    %vm132 = vcmp.eq.s32.totalorder %v127, 2
    %v133 = vxor.u32 %v123, 2147483648
    %v134 = vsel %vm132, %v133, %v124
    %v135 = vsel %vm128, %v131, %v134
    %v136 = vsel %vm125, nan, %v135
    %v137 = vand.u32 2147483647, %v32
    %vm138 = vcmp.le.f32.partialorder %v137, 0.7853982
    %vm139 = vcmp.lt.s32.totalorder %v32, 0
    %v140 = vand.u32 %v32, 2139095040
    %v141 = vshrl.u32 %v140, 23
    %v142 = vsub.s32 %v141, 127
    %v143 = vand.u32 2147483647, %v32
    %v144 = vand.u32 %v143, 8388607
    %v145 = vor.u32 %v144, 8388608
    %v146 = vsub.s32 0, %v145
    %v147 = vadd.s32 %v142, 1
    %vm148 = vcmp.gt.s32.totalorder %v147, 0
    %v149 = vsel %vm148, %v147, 0
    %v150 = vshrl.u32 %v149, 5
    %v151 = vand.u32 %v149, 31
    %v152 = vsub.s32 32, %v151
    %v153 = vshrl.u32 683565275, %v152
    %v154 = vshll.u32 683565275, %v151
    %v155 = vshrl.u32 2475754826, %v152
    %v156 = vor.u32 %v154, %v155
    %v157 = vshll.u32 2475754826, %v151
    %v158 = vshrl.u32 2131351028, %v152
    %v159 = vor.u32 %v157, %v158
    %v160 = vshll.u32 2131351028, %v151
    %v161 = vshrl.u32 2102212464, %v152
    %v162 = vor.u32 %v160, %v161
    %v163 = vshll.u32 2102212464, %v151
    %v164 = vshrl.u32 920167782, %v152
    %v165 = vor.u32 %v163, %v164
    %v166 = vshll.u32 920167782, %v151
    %v167 = vshrl.u32 1326507024, %v152
    %v168 = vor.u32 %v166, %v167
    %vm169 = vcmp.lt.s32.totalorder %v150, 1
    %vm170 = vcmp.lt.s32.totalorder %v150, 2
    %vm171 = vcmp.lt.s32.totalorder %v150, 3
    %vm172 = vcmp.lt.s32.totalorder %v150, 4
    %v173 = vsel %vm169, %v153, %v156
    %v174 = vsel %vm172, %v162, 2102212464
    %v175 = vsel %vm171, %v159, %v174
    %v176 = vsel %vm170, %v173, %v175
    %v177 = vsel %vm169, %v156, %v159
    %v178 = vsel %vm172, %v165, 920167782
    %v179 = vsel %vm171, %v162, %v178
    %v180 = vsel %vm170, %v177, %v179
    %v181 = vsel %vm169, %v159, %v162
    %v182 = vsel %vm172, %v168, 1326507024
    %v183 = vsel %vm171, %v165, %v182
    %v184 = vsel %vm170, %v181, %v183
    %v185 = vshll.u32 %v145, 8
    %v186 = vmul.u32.u64.compose %v185, %v184
    %v187 = vextract.low.u32 %v186
    %v188 = vextract.high.u32 %v186
    %v189 = vmul.u32.u64.compose %v185, %v180
    %v190 = vextract.low.u32 %v189
    %v191 = vextract.high.u32 %v189
    %v192 = vmul.u32 %v185, %v176
    %v193 = vadd.s32 %v188, %v190
    %vm194 = vc.u32 %v188, %v190
    %v195 = vadd.s32 %v191, 1
    %v196 = vsel %vm194, %v195, %v191
    %v197 = vadd.s32 %v192, %v196
    %v198 = vadd.s32 %v197, 536870912
    %v199 = vshrl.u32 %v198, 30
    %v200 = vshll.u32 %v199, 30
    %v201 = vsub.s32 %v197, %v200
    %vm202 = vcmp.lt.s32.totalorder %v201, 0
    %v203 = vsub.s32 0, %v201
    %v204 = vsel %vm202, %v203, %v201
    %v205 = vclz %v204
    %v206 = vsub.s32 %v205, 2
    %vm207 = vcmp.gt.s32.totalorder 0, %v206
    %v208 = vsel %vm207, 0, %v206
    %v209 = vsub.s32 32, %v208
    %v210 = vshll.u32 %v201, %v208
    %v211 = vshrl.u32 %v193, %v209
    %v212 = vor.u32 %v210, %v211
    %v213 = vsub.s32 4294967266, %v208
    %v214 = vadd.s32 %v213, 127
    %v215 = vshll.u32 %v214, 23
    %v216 = vor.u32 4788187, %v215
    %v217 = vand.u32 2147483647, %v216
    %v219 = vcvt.s32.f32 %v212
    %v220 = vmul.f32 %v219, %v217
    %v221 = vxor.u32 %v220, 2147483648
    %v222 = vsel %vm139, %v221, %v220
    %v223 = vsub.s32 4, %v199
    %v224 = vsel %vm139, %v223, %v199
    %v225 = vsel %vm138, %v32, %v222
    %v226 = vsel %vm138, 0, %v224
    %v227 = vcosq.f32.pop %v225
    %v228 = vsinq.f32.pop %v225
    %vm229 = vweird.f32 %v32
    %v230 = vadd.s32 %v226, 3
    %v231 = vand.u32 %v230, 3
    %vm232 = vcmp.lt.s32.totalorder %v231, 2
    %vm233 = vcmp.eq.s32.totalorder %v231, 0
    %v234 = vxor.u32 %v228, 2147483648
    %v235 = vsel %vm233, %v227, %v234
    %vm236 = vcmp.eq.s32.totalorder %v231, 2
    %v237 = vxor.u32 %v227, 2147483648
    %v238 = vsel %vm236, %v237, %v228
    %v239 = vsel %vm232, %v235, %v238
    %v240 = vsel %vm229, nan, %v239
    %241 = vst [vmem:[#allocation6] sm:$0xff] %v136
    %242 = vst [vmem:[#allocation6 + $0x8] sm:$0xff] %v240
    // Predicated region
    $region14: #{tpu_custom_call.1} parent=1 // pred_check
      _
    $region15: #{tpu_custom_call.1} parent=1 // pred_check_branch
      %244 = sbr.rel (0) target = $region17
    $region16: #{tpu_custom_call.1} parent=1 // pred_region
      %s246 = ssub.s32 256, 256
      %247 = vsyncadd [#allocation5], %s246
      %s248 = sshll.u32 [#allocation6], 4
      %s249 = int_to_ptr.vmem [resolvable:$true] %s248
      %254 = dma.vmem_to_hbm [thread:$0]  %s249, 256, %s2, [#allocation5], 128, 128, 8
    $region17: #{tpu_custom_call.1} parent=1 // pred_fallthru
      _
    // Predicated region
    $region18: #{tpu_custom_call.1} parent=1 // pred_check
      _
    $region19: #{tpu_custom_call.1} parent=1 // pred_check_branch
      %256 = sbr.rel (0) target = $region21
    $region20: #{tpu_custom_call.1} parent=1 // pred_region
      %257 = dma.done [#allocation5], 256
    $region21: #{tpu_custom_call.1} parent=1 // pred_fallthru
      _
    %258 = vsyncpa [#allocation4], 1
    %259 = vsyncpa [#allocation5], 1

</llo_original>
